<compile_context>
chip_gen: v5e
topology: v5e:2x2
jax: 0.10.0
libtpu: 0.0.40
codegen_flags: <defaults>
</compile_context>

<pallas_src>
import functools

import jax
import jax.numpy as jnp
from jax.experimental import pallas as pl
from jax.experimental.pallas import tpu as pltpu


def _round_up(x, m):
    return ((x + m - 1) // m) * m


# ---------------------------------------------------------------------------
# Kernel 1: per-pixel softmax / NLL / target prob / target weight (packed out)
# ---------------------------------------------------------------------------
def _perpixel_kernel(x_ref, lbl_ref, packed_ref, *,
                     ignore_index, class_weights, hw128, rows):
    """x_ref: (1,C,S,128) logits (native dtype), lbl_ref: (1,S,128) int32,
    packed_ref: (3,1,S,128) f32.  Pixels live on (sublane, lane)."""
    x = x_ref[0].astype(jnp.float32)              # (C, S, 128)
    lbl = lbl_ref[0]                              # (S, 128)

    # class-axis (leading-axis) reductions == C-1 elementwise VPU ops on full
    # (S,128) vregs; no cross-sublane XLU work anywhere in this kernel.
    m = jnp.max(x, axis=0)                        # (S, 128)
    s = jnp.sum(jnp.exp(x - m[None]), axis=0)     # (S, 128)

    # one-hot gather of the target logit (ignore label never matches a class)
    cls = jax.lax.broadcasted_iota(jnp.int32, x.shape, 0)
    x_t = jnp.sum(jnp.where(cls == lbl[None], x, 0.0), axis=0)

    nll = jnp.log(s) + m - x_t                    # -log_softmax[target]
    prob = jnp.exp(-nll)                          # softmax prob of target class

    # class weight of the target class — compile-time constants baked in
    w_t = jnp.zeros_like(prob)
    for ci, wc in enumerate(class_weights):
        w_t = jnp.where(lbl == ci, jnp.float32(wc), w_t)

    valid = lbl != ignore_index                   # (S, 128) bool
    if hw128 % rows != 0:
        # ragged last pixel tile: mask rows past the true spatial extent
        t = pl.program_id(1)
        row_ids = jax.lax.broadcasted_iota(jnp.int32, lbl.shape, 0) + t * rows
        valid = jnp.logical_and(valid, row_ids < hw128)

    packed_ref[0, 0, :, :] = jnp.where(valid, prob, 2.0)       # invalid -> 2.0
    packed_ref[1, 0, :, :] = jnp.where(valid, w_t * nll, 0.0)  # weighted NLL
    packed_ref[2, 0, :, :] = jnp.where(valid, w_t, 0.0)        # weight (denom)


# ---------------------------------------------------------------------------
# Kernel 2: OHEM-masked weighted cross-entropy accumulation
# ---------------------------------------------------------------------------
def _ohem_reduce_kernel(thr_ref, packed_ref, acc_ref, *,
                        total_rows, rows, inner, need_mask):
    """thr_ref: (1,) f32 in SMEM, packed_ref: (3,S2,128) f32,
    acc_ref: (1,5,S2,128) f32 = [keep*w*nll, keep*w, w*nll, w, valid_count]."""
    p = pl.program_id(0)
    j = pl.program_id(1)

    @pl.when(j == 0)
    def _():
        acc_ref[...] = jnp.zeros_like(acc_ref)

    thr = thr_ref[0]
    prob = packed_ref[0]                          # (S2, 128)
    wnll = packed_ref[1]                          # weight * nll * valid
    wv = packed_ref[2]                            # weight * valid

    zero = jnp.zeros_like(prob)
    keep = prob <= thr                            # OHEM keep mask
    is_valid = prob < 1.5                         # invalid/padded pixels carry 2.0

    if need_mask:
        # ragged last tile and/or duplicated (clamped) step of the 2-way split
        tile = p * inner + j
        row_ids = jax.lax.broadcasted_iota(jnp.int32, prob.shape, 0) + tile * rows
        rm = row_ids < total_rows
        keep = jnp.logical_and(keep, rm)
        is_valid = jnp.logical_and(is_valid, rm)
        num_all = jnp.where(rm, wnll, zero)
        den_all = jnp.where(rm, wv, zero)
    else:
        num_all = wnll
        den_all = wv

    upd = jnp.stack([jnp.where(keep, wnll, zero),
                     jnp.where(keep, wv, zero),
                     num_all,
                     den_all,
                     jnp.where(is_valid, jnp.ones_like(prob), zero)], axis=0)
    acc_ref[...] += upd[None]                     # single (1,5,S2,128) accumulate


# ---------------------------------------------------------------------------
# pallas_call wrappers
# ---------------------------------------------------------------------------
def _per_pixel_pass(x4, lbl3, class_weights, ignore_index, rows):
    n, c, hw128, _ = x4.shape
    s1 = hw128 if hw128 <= rows else rows         # full dim, or multiple of 8
    t = pl.cdiv(hw128, s1)
    kernel = functools.partial(_perpixel_kernel,
                               ignore_index=ignore_index,
                               class_weights=tuple(class_weights),
                               hw128=hw128, rows=s1)
    packed = pl.pallas_call(
        kernel,
        out_shape=jax.ShapeDtypeStruct((3, n, hw128, 128), jnp.float32),
        grid_spec=pltpu.PrefetchScalarGridSpec(
            num_scalar_prefetch=0,
            grid=(n, t),
            in_specs=[pl.BlockSpec((1, c, s1, 128), lambda b, i: (b, 0, i, 0)),
                      pl.BlockSpec((1, s1, 128), lambda b, i: (b, i, 0))],
            out_specs=pl.BlockSpec((3, 1, s1, 128), lambda b, i: (0, b, i, 0)),
        ),
        compiler_params=pltpu.CompilerParams(
            dimension_semantics=("parallel", "parallel"),
            vmem_limit_bytes=32 * 1024 * 1024),
    )(x4, lbl3)
    return packed                                 # (3, N, HW128, 128)


def _reduce_pass(thr_arr, packed, rows):
    _, n, hw128, _ = packed.shape
    total_rows = n * hw128
    s2 = total_rows if total_rows <= rows else rows
    n_tiles = pl.cdiv(total_rows, s2)
    inner = pl.cdiv(n_tiles, 2)                   # always 2-way outer split
    need_mask = (2 * inner * s2) != total_rows

    packed_flat = packed.reshape(3, total_rows, 128)   # free reshape
    kernel = functools.partial(_ohem_reduce_kernel,
                               total_rows=total_rows, rows=s2,
                               inner=inner, need_mask=need_mask)
    acc = pl.pallas_call(
        kernel,
        out_shape=jax.ShapeDtypeStruct((2, 5, s2, 128), jnp.float32),
        grid_spec=pltpu.PrefetchScalarGridSpec(
            num_scalar_prefetch=0,
            grid=(2, inner),
            in_specs=[pl.BlockSpec(memory_space=pltpu.MemorySpace.SMEM),
                      pl.BlockSpec(
                          (3, s2, 128),
                          lambda p, j: (0, jnp.minimum(p * inner + j,
                                                       n_tiles - 1), 0))],
            out_specs=pl.BlockSpec((1, 5, s2, 128), lambda p, j: (p, 0, 0, 0)),
        ),
        compiler_params=pltpu.CompilerParams(
            dimension_semantics=("parallel", "arbitrary"),
            vmem_limit_bytes=32 * 1024 * 1024),
    )(thr_arr, packed_flat)
    return acc                                    # (2, 5, S2, 128)


def _kth_smallest(vals, k):
    """Exact k-th smallest of a 1-D f32 array; hierarchical for large inputs."""
    n = vals.shape[0]
    chunk = 4096
    if n > 65536 and n % chunk == 0 and k <= chunk:
        # two-stage exact min-k: per-row k smallest, then k smallest of the
        # candidates — avoids a global sort-like top_k over all n elements.
        cand, _ = jax.lax.top_k(-vals.reshape(n // chunk, chunk), k)
        kth_neg, _ = jax.lax.top_k(cand.reshape(-1), k)
        return -kth_neg[k - 1]
    neg, _ = jax.lax.top_k(-vals, k)
    return -neg[k - 1]


# ---------------------------------------------------------------------------
# Module equivalent
# ---------------------------------------------------------------------------
class MixSoftmaxCrossEntropyOHEMLoss:
    """JAX/Pallas port of MixSoftmaxCrossEntropyOHEMLoss (forward only)."""

    # Deterministic class weights from the PyTorch __init__ (use_weight=True)
    _CLASS_WEIGHT = (1.4543, 43.8739, 34.241, 47.3663, 27.4869)

    def __init__(self, aux=False, aux_weight=0.2, ignore_index=-1,
                 thresh=0.7, min_kept=256, use_weight=True):
        self.aux = aux
        self.aux_weight = float(aux_weight)
        self.ignore_index = int(ignore_index)
        self.thresh = float(thresh)
        self.min_kept = int(min_kept)
        self.use_weight = bool(use_weight)
        # pixel rows (of 128 lanes) per grid step: 256*128 = 32768 px (kernel 1)
        # and 512*128 = 65536 px (kernel 2).  Sweep 128..512 per chip if needed.
        self._rows_k1 = 256
        self._rows_k2 = 512

    def _class_weights(self, c):
        if self.use_weight:
            assert c == len(self._CLASS_WEIGHT), "class weight vector expects C=5"
            return tuple(float(v) for v in self._CLASS_WEIGHT)
        return tuple(1.0 for _ in range(c))

    def _base_loss(self, predict, target):
        n, c, h, w = predict.shape
        hw = h * w
        hw_pad = _round_up(hw, 128)

        x = predict.reshape(n, c, hw)                 # free reshape, native dtype
        lbl = target.reshape(n, hw).astype(jnp.int32)
        if hw_pad != hw:
            # rare path: lane-align the flattened spatial dim (padded pixels
            # carry ignore_index so they are naturally excluded everywhere).
            x = jnp.pad(x, ((0, 0), (0, 0), (0, hw_pad - hw)))
            lbl = jnp.pad(lbl, ((0, 0), (0, hw_pad - hw)),
                          constant_values=self.ignore_index)
        hw128 = hw_pad // 128
        x4 = x.reshape(n, c, hw128, 128)              # free
        lbl3 = lbl.reshape(n, hw128, 128)             # free

        class_weights = self._class_weights(c)

        # ---- kernel 1: per-pixel softmax / gather -> packed intermediate ----
        packed = _per_pixel_pass(x4, lbl3, class_weights, self.ignore_index,
                                 self._rows_k1)

        # ---- OHEM threshold: k-th smallest target prob (JAX glue) ----
        # TODO(synk): no clean in-kernel Pallas primitive for a global k-th
        #             order statistic; hierarchical jax.lax.top_k is used.
        if self.min_kept > 0:
            prob_flat = packed[0].reshape(-1)
            k_sel = min(self.min_kept, int(prob_flat.shape[0]))
            kth = _kth_smallest(prob_flat, k_sel)
            thr_base = jnp.maximum(kth, jnp.float32(self.thresh))
        else:
            thr_base = jnp.float32(self.thresh)
        thr_arr = jnp.reshape(thr_base, (1,)).astype(jnp.float32)

        # ---- kernel 2: filtered + unfiltered weighted CE sums + valid count --
        acc = _reduce_pass(thr_arr, packed, self._rows_k2)
        sums = jnp.sum(acc, axis=(0, 2, 3))           # (5,)
        num_valid = sums[4]
        # OHEM filtering only applies when num_valid > min_kept (otherwise all
        # valid pixels are kept) — matches the torch reference's
        # `min_kept >= num_valid` early-out branch.
        use_ohem = num_valid > jnp.float32(self.min_kept)
        num = jnp.where(use_ohem, sums[0], sums[2])
        den = jnp.where(use_ohem, sums[1], sums[3])
        # torch CrossEntropyLoss(weight=..., ignore_index=...), reduction='mean';
        # guard the degenerate all-ignored case (would otherwise be 0/0).
        return jnp.where(den > 0, num / den, jnp.float32(0.0))

    def __call__(self, preds, target):
        preds = tuple(preds) if isinstance(preds, (tuple, list)) else (preds,)
        if self.aux:
            loss = self._base_loss(preds[0], target)
            for i in range(1, len(preds)):
                loss = loss + self.aux_weight * self._base_loss(preds[i], target)
            return loss
        return self._base_loss(preds[0], target)


# ---------------------------------------------------------------------------
if __name__ == "__main__":
    key = jax.random.PRNGKey(0)
    k1, k2 = jax.random.split(key)

    N, C, H, W = 2, 5, 16, 16   # C=5 to match the class-weight vector
    predict = jax.random.normal(k1, (N, C, H, W), dtype=jnp.float32)
    # labels in [-1, C): includes some ignore_index pixels
    target = jax.random.randint(k2, (N, H, W), minval=-1, maxval=C).astype(jnp.int32)

    loss_fn = MixSoftmaxCrossEntropyOHEMLoss(aux=False, aux_weight=0.2,
                                             ignore_index=-1, thresh=0.7,
                                             min_kept=256, use_weight=True)
    loss = loss_fn((predict,), target)
    loss = jax.block_until_ready(loss)
    assert loss.shape == () and bool(jnp.isfinite(loss))
    print("KERNEL_OK")
</pallas_src>

<mosaic_0001>
module attributes {stable_mosaic.version = 11 : i64} {
  func.func @_perpixel_kernel(%arg0: i32, %arg1: i32, %arg2: memref<1x5x2x128xf32, #tpu.memory_space<vmem>>, %arg3: memref<1x2x128xi32, #tpu.memory_space<vmem>>, %arg4: memref<3x1x2x128xf32, #tpu.memory_space<vmem>>) attributes {dimension_semantics = [#tpu.dimension_semantics<parallel>, #tpu.dimension_semantics<parallel>], iteration_bounds = array<i64: 2, 1>, scalar_prefetch = 0 : i64, scratch_operands = 0 : i64, tpu.core_type = #tpu.core_type<tc>, window_params = [{transform_indices = @transform_0, window_bounds = array<i64: 1, 5, 2, 128>}, {transform_indices = @transform_1, window_bounds = array<i64: 1, 2, 128>}, {transform_indices = @transform_2, window_bounds = array<i64: 3, 1, 2, 128>}]} {
    %c0 = arith.constant 0 : index
    %c0_0 = arith.constant 0 : index
    %c0_1 = arith.constant 0 : index
    %c0_2 = arith.constant 0 : index
    %0 = vector.load %arg2[%c0, %c0_0, %c0_1, %c0_2] : memref<1x5x2x128xf32, #tpu.memory_space<vmem>>, vector<1x5x2x128xf32>
    %1 = vector.shape_cast %0 : vector<1x5x2x128xf32> to vector<5x2x128xf32>
    %c0_3 = arith.constant 0 : index
    %c0_4 = arith.constant 0 : index
    %c0_5 = arith.constant 0 : index
    %2 = vector.load %arg3[%c0_3, %c0_4, %c0_5] : memref<1x2x128xi32, #tpu.memory_space<vmem>>, vector<1x2x128xi32>
    %3 = vector.shape_cast %2 : vector<1x2x128xi32> to vector<2x128xi32>
    %cst = arith.constant dense<0xFF800000> : vector<2x128xf32>
    %4 = vector.multi_reduction <maximumf>, %1, %cst [0] : vector<5x2x128xf32> to vector<2x128xf32>
    %5 = vector.shape_cast %4 : vector<2x128xf32> to vector<1x2x128xf32>
    %6 = vector.broadcast %5 : vector<1x2x128xf32> to vector<5x2x128xf32>
    %7 = arith.subf %1, %6 : vector<5x2x128xf32>
    %8 = math.exp %7 : vector<5x2x128xf32>
    %cst_6 = arith.constant dense<0.000000e+00> : vector<2x128xf32>
    %9 = vector.multi_reduction <add>, %8, %cst_6 [0] : vector<5x2x128xf32> to vector<2x128xf32>
    %10 = tpu.iota {dimensions = array<i32: 0>} : vector<5x2x128xi32>
    %11 = vector.shape_cast %3 : vector<2x128xi32> to vector<1x2x128xi32>
    %12 = vector.broadcast %11 : vector<1x2x128xi32> to vector<5x2x128xi32>
    %13 = arith.cmpi eq, %10, %12 : vector<5x2x128xi32>
    %cst_7 = arith.constant 0.000000e+00 : f32
    %14 = vector.broadcast %cst_7 : f32 to vector<5x2x128xf32>
    %15 = arith.select %13, %1, %14 : vector<5x2x128xi1>, vector<5x2x128xf32>
    %cst_8 = arith.constant dense<0.000000e+00> : vector<2x128xf32>
    %16 = vector.multi_reduction <add>, %15, %cst_8 [0] : vector<5x2x128xf32> to vector<2x128xf32>
    %17 = math.log %9 : vector<2x128xf32>
    %18 = arith.addf %17, %4 : vector<2x128xf32>
    %19 = arith.subf %18, %16 : vector<2x128xf32>
    %cst_9 = arith.constant 0.000000e+00 : f32
    %20 = vector.broadcast %cst_9 : f32 to vector<2x128xf32>
    %21 = arith.subf %20, %19 : vector<2x128xf32>
    %22 = math.exp %21 : vector<2x128xf32>
    %cst_10 = arith.constant 0.000000e+00 : f32
    %23 = vector.broadcast %cst_10 : f32 to vector<2x128xf32>
    %c0_i32 = arith.constant 0 : i32
    %24 = vector.broadcast %c0_i32 : i32 to vector<2x128xi32>
    %25 = arith.cmpi eq, %3, %24 : vector<2x128xi32>
    %cst_11 = arith.constant 1.454300e+00 : f32
    %26 = vector.broadcast %cst_11 : f32 to vector<2x128xf32>
    %27 = arith.select %25, %26, %23 : vector<2x128xi1>, vector<2x128xf32>
    %c1_i32 = arith.constant 1 : i32
    %28 = vector.broadcast %c1_i32 : i32 to vector<2x128xi32>
    %29 = arith.cmpi eq, %3, %28 : vector<2x128xi32>
    %cst_12 = arith.constant 4.387390e+01 : f32
    %30 = vector.broadcast %cst_12 : f32 to vector<2x128xf32>
    %31 = arith.select %29, %30, %27 : vector<2x128xi1>, vector<2x128xf32>
    %c2_i32 = arith.constant 2 : i32
    %32 = vector.broadcast %c2_i32 : i32 to vector<2x128xi32>
    %33 = arith.cmpi eq, %3, %32 : vector<2x128xi32>
    %cst_13 = arith.constant 3.424100e+01 : f32
    %34 = vector.broadcast %cst_13 : f32 to vector<2x128xf32>
    %35 = arith.select %33, %34, %31 : vector<2x128xi1>, vector<2x128xf32>
    %c3_i32 = arith.constant 3 : i32
    %36 = vector.broadcast %c3_i32 : i32 to vector<2x128xi32>
    %37 = arith.cmpi eq, %3, %36 : vector<2x128xi32>
    %cst_14 = arith.constant 4.736630e+01 : f32
    %38 = vector.broadcast %cst_14 : f32 to vector<2x128xf32>
    %39 = arith.select %37, %38, %35 : vector<2x128xi1>, vector<2x128xf32>
    %c4_i32 = arith.constant 4 : i32
    %40 = vector.broadcast %c4_i32 : i32 to vector<2x128xi32>
    %41 = arith.cmpi eq, %3, %40 : vector<2x128xi32>
    %cst_15 = arith.constant 2.748690e+01 : f32
    %42 = vector.broadcast %cst_15 : f32 to vector<2x128xf32>
    %43 = arith.select %41, %42, %39 : vector<2x128xi1>, vector<2x128xf32>
    %c-1_i32 = arith.constant -1 : i32
    %44 = vector.broadcast %c-1_i32 : i32 to vector<2x128xi32>
    %45 = arith.cmpi ne, %3, %44 : vector<2x128xi32>
    %cst_16 = arith.constant 2.000000e+00 : f32
    %46 = vector.broadcast %cst_16 : f32 to vector<2x128xf32>
    %47 = arith.select %45, %22, %46 : vector<2x128xi1>, vector<2x128xf32>
    %c0_17 = arith.constant 0 : index
    %c0_18 = arith.constant 0 : index
    %c0_19 = arith.constant 0 : index
    %c0_20 = arith.constant 0 : index
    %48 = vector.load %arg4[%c0_17, %c0_18, %c0_19, %c0_20] : memref<3x1x2x128xf32, #tpu.memory_space<vmem>>, vector<1x1x2x128xf32>
    %49 = vector.shape_cast %48 : vector<1x1x2x128xf32> to vector<2x128xf32>
    %50 = vector.shape_cast %47 : vector<2x128xf32> to vector<1x1x2x128xf32>
    tpu.vector_store %arg4[%c0_17, %c0_18, %c0_19, %c0_20], %50 {strides = array<i32>} : memref<3x1x2x128xf32, #tpu.memory_space<vmem>>, vector<1x1x2x128xf32>,
    %51 = arith.mulf %43, %19 : vector<2x128xf32>
    %cst_21 = arith.constant 0.000000e+00 : f32
    %52 = vector.broadcast %cst_21 : f32 to vector<2x128xf32>
    %53 = arith.select %45, %51, %52 : vector<2x128xi1>, vector<2x128xf32>
    %c1 = arith.constant 1 : index
    %c0_22 = arith.constant 0 : index
    %c0_23 = arith.constant 0 : index
    %c0_24 = arith.constant 0 : index
    %54 = vector.load %arg4[%c1, %c0_22, %c0_23, %c0_24] : memref<3x1x2x128xf32, #tpu.memory_space<vmem>>, vector<1x1x2x128xf32>
    %55 = vector.shape_cast %54 : vector<1x1x2x128xf32> to vector<2x128xf32>
    %56 = vector.shape_cast %53 : vector<2x128xf32> to vector<1x1x2x128xf32>
    tpu.vector_store %arg4[%c1, %c0_22, %c0_23, %c0_24], %56 {strides = array<i32>} : memref<3x1x2x128xf32, #tpu.memory_space<vmem>>, vector<1x1x2x128xf32>,
    %cst_25 = arith.constant 0.000000e+00 : f32
    %57 = vector.broadcast %cst_25 : f32 to vector<2x128xf32>
    %58 = arith.select %45, %43, %57 : vector<2x128xi1>, vector<2x128xf32>
    %c2 = arith.constant 2 : index
    %c0_26 = arith.constant 0 : index
    %c0_27 = arith.constant 0 : index
    %c0_28 = arith.constant 0 : index
    %59 = vector.load %arg4[%c2, %c0_26, %c0_27, %c0_28] : memref<3x1x2x128xf32, #tpu.memory_space<vmem>>, vector<1x1x2x128xf32>
    %60 = vector.shape_cast %59 : vector<1x1x2x128xf32> to vector<2x128xf32>
    %61 = vector.shape_cast %58 : vector<2x128xf32> to vector<1x1x2x128xf32>
    tpu.vector_store %arg4[%c2, %c0_26, %c0_27, %c0_28], %61 {strides = array<i32>} : memref<3x1x2x128xf32, #tpu.memory_space<vmem>>, vector<1x1x2x128xf32>,
    return
  }
  func.func @transform_0(%arg0: i32, %arg1: i32) -> (i32, i32, i32, i32) {
    %c0_i32 = arith.constant 0 : i32
    %c0_i32_0 = arith.constant 0 : i32
    %c0_i32_1 = arith.constant 0 : i32
    return %arg0, %c0_i32, %arg1, %c0_i32_0 : i32, i32, i32, i32
  }
  func.func @transform_1(%arg0: i32, %arg1: i32) -> (i32, i32, i32) {
    %c0_i32 = arith.constant 0 : i32
    %c0_i32_0 = arith.constant 0 : i32
    return %arg0, %arg1, %c0_i32 : i32, i32, i32
  }
  func.func @transform_2(%arg0: i32, %arg1: i32) -> (i32, i32, i32, i32) {
    %c0_i32 = arith.constant 0 : i32
    %c0_i32_0 = arith.constant 0 : i32
    %c0_i32_1 = arith.constant 0 : i32
    return %c0_i32, %arg0, %arg1, %c0_i32_0 : i32, i32, i32, i32
  }
}

</mosaic_0001>

<llo_original>
// kernel: tpu_custom_call.1
$region0: #{tpu_custom_call.1}
  #allocation0 [shape = 'u32[]', space=smem, size = 0x4, offset = 0x4, fixed_abs, tag = 'smem constant byte address 0x4 - core index']
  #allocation1 [shape = 'u32[72,128]{1,0:T(1,128)}', space=vmem, size = 0x9000, scoped, tag = 'internal scratch']
  %s0 = inlined_call_operand.hbm [shape: f32[2,5,2,128], index: 0, kind: input, shape index: {}]
  %s1 = inlined_call_operand.hbm [shape: s32[2,2,128], index: 1, kind: input, shape index: {}]
  %s2 = inlined_call_operand.hbm [shape: f32[3,2,2,128], index: 2, kind: output, shape index: {}]
  %s3 = sld [smem:[#allocation0]]
  $region49: #{tpu_custom_call.1} parent=0
    _
  %s5 = ssub.s32 1, %s3
  %s6 = scalar_select 0, %s5, %s3
  $region1: #{tpu_custom_call.1} parent=0
    #allocation2 [shape = 'u8[10240]{0}', space=vmem, size = 0x2800, scoped, tag = 'input window, operand 0']
    #allocation3 [shape = 's32[2]{0}', space=sflag, size = 0x8, scoped, tag = 'scoped memory for tpu_custom_call.1']
    #allocation4 [shape = 's32[2]{0}', space=sflag, size = 0x8, scoped, tag = 'scoped memory for tpu_custom_call.1']
    #allocation5 [shape = 'u8[2048]{0}', space=vmem, size = 0x800, scoped, tag = 'input window, operand 1']
    #allocation6 [shape = 's32[2]{0}', space=sflag, size = 0x8, scoped, tag = 'scoped memory for tpu_custom_call.1']
    #allocation7 [shape = 'u8[6144]{0}', space=vmem, size = 0x1800, scoped, tag = 'output window, operand 0']
    %7 = vsyncpa [#allocation3], 0
    %s8 = scalar_lea.sflag [#allocation3], 1
    %9 = vsyncpa %s8, 0
    %10 = vsyncpa [#allocation6], 0
    %s11 = scalar_lea.sflag [#allocation6], 1
    %12 = vsyncpa %s11, 0
    %13 = vsyncpa [#allocation4], 0
    %s14 = scalar_lea.sflag [#allocation4], 1
    %15 = vsyncpa %s14, 0
    loop: start=0, step=1, limit=4
    $region2: #{tpu_custom_call.1} parent=1 // loop_pre_header
      _
    $region3: #{tpu_custom_call.1} parent=1 // loop_header
      %s17 = sphi 0, %s21
      %p18 = scmp.ge.s32.totalorder %s17, 4
      %s24 = sphi 0, %s36
      %s25 = sphi 0, %s32
      %s26 = sphi 0, %s24
      %s27 = sphi 0, %s25
      %s28 = sphi 0, %s26
      %s29 = sphi 0, %s27
      %s41 = sphi 0, %s43
      %s44 = sphi 0, %s41
      %s45 = sphi 0, %s44
      %s61 = sphi 0, %s45
      %s69 = sphi 0, %s71
      %s72 = sphi 0, %s69
      %s73 = sphi 0, %s72
      %s89 = sphi 0, %s73
      %s97 = sphi 0, %s99
      %s100 = sphi 0, %s97
      %s101 = sphi 0, %s100
      %s117 = sphi 0, %s101
    $region4: #{tpu_custom_call.1} parent=1 // loop_header_branch
      %20 = sbr.rel (%p18) target = $region8
    $region5: #{tpu_custom_call.1} parent=1 // loop_body
      %s22 = ssub.s32 %s17, 1
      %s23 = ssub.s32 %s17, 2
      %s30 = sadd.s32 1, %s25
      %p31 = scmp.ge.s32.totalorder %s30, 1
      %s32 = scalar_select %p31, 0, %s30
      %s33 = sadd.s32 1, %s24
      %s34 = scalar_select %p31, %s33, %s24
      %p35 = scmp.ge.s32.totalorder %s34, 2
      %s36 = scalar_select %p35, 0, %s34
      %s37 = ssub.s32 %s24, %s36
      %s38 = ssub.s32 %s25, %s32
      %s39 = sor.u32 %s37, %s38
      %p40 = scmp.eq.s32.totalorder %s39, 0
      %s42 = sadd.s32 %s41, 1
      %s43 = scalar_select %p40, %s41, %s42
      %p46 = pneg %p40
      %p47 = scmp.eq.s32.totalorder %s17, 1
      %p48 = por %p46, %p47
      %p49 = scmp.ne.s32.totalorder %s41, %s44
      %p50 = scmp.eq.s32.totalorder %s17, 0
      %p51 = por %p49, %p50
      %p52 = scmp.ne.s32.totalorder %s41, %s44
      %p53 = scmp.eq.s32.totalorder %s22, 1
      %p54 = por %p52, %p53
      %p55 = scmp.ne.s32.totalorder %s44, %s45
      %p56 = scmp.eq.s32.totalorder %s22, 0
      %p57 = por %p55, %p56
      %p58 = scmp.ne.s32.totalorder %s44, %s45
      %p59 = scmp.eq.s32.totalorder %s23, 1
      %p60 = por %p58, %p59
      %p62 = scmp.ne.s32.totalorder %s45, %s61
      %p63 = scmp.eq.s32.totalorder %s23, 0
      %p64 = por %p62, %p63
      %s65 = ssub.s32 %s24, %s36
      %s66 = ssub.s32 %s25, %s32
      %s67 = sor.u32 %s65, %s66
      %p68 = scmp.eq.s32.totalorder %s67, 0
      %s70 = sadd.s32 %s69, 1
      %s71 = scalar_select %p68, %s69, %s70
      %p74 = pneg %p68
      %p75 = scmp.eq.s32.totalorder %s17, 1
      %p76 = por %p74, %p75
      %p77 = scmp.ne.s32.totalorder %s69, %s72
      %p78 = scmp.eq.s32.totalorder %s17, 0
      %p79 = por %p77, %p78
      %p80 = scmp.ne.s32.totalorder %s69, %s72
      %p81 = scmp.eq.s32.totalorder %s22, 1
      %p82 = por %p80, %p81
      %p83 = scmp.ne.s32.totalorder %s72, %s73
      %p84 = scmp.eq.s32.totalorder %s22, 0
      %p85 = por %p83, %p84
      %p86 = scmp.ne.s32.totalorder %s72, %s73
      %p87 = scmp.eq.s32.totalorder %s23, 1
      %p88 = por %p86, %p87
      %p90 = scmp.ne.s32.totalorder %s73, %s89
      %p91 = scmp.eq.s32.totalorder %s23, 0
      %p92 = por %p90, %p91
      %s93 = ssub.s32 %s24, %s36
      %s94 = ssub.s32 %s25, %s32
      %s95 = sor.u32 %s93, %s94
      %p96 = scmp.eq.s32.totalorder %s95, 0
      %s98 = sadd.s32 %s97, 1
      %s99 = scalar_select %p96, %s97, %s98
      %p102 = pneg %p96
      %p103 = scmp.eq.s32.totalorder %s17, 1
      %p104 = por %p102, %p103
      %p105 = scmp.ne.s32.totalorder %s97, %s100
      %p106 = scmp.eq.s32.totalorder %s17, 0
      %p107 = por %p105, %p106
      %p108 = scmp.ne.s32.totalorder %s97, %s100
      %p109 = scmp.eq.s32.totalorder %s22, 1
      %p110 = por %p108, %p109
      %p111 = scmp.ne.s32.totalorder %s100, %s101
      %p112 = scmp.eq.s32.totalorder %s22, 0
      %p113 = por %p111, %p112
      %p114 = scmp.ne.s32.totalorder %s100, %s101
      %p115 = scmp.eq.s32.totalorder %s23, 1
      %p116 = por %p114, %p115
      %p118 = scmp.ne.s32.totalorder %s101, %s117
      %p119 = scmp.eq.s32.totalorder %s23, 0
      %p120 = por %p118, %p119
      %p121 = scmp.le.s32.totalorder 1, %s17
      %p122 = scmp.lt.s32.totalorder %s17, 3
      %p123 = pnand %p121, %p122
      %p124 = pneg %p123
      // Predicated region
      $region9: #{tpu_custom_call.1} parent=5 // pred_check
        _
      $region10: #{tpu_custom_call.1} parent=5 // pred_check_branch
        %126 = sbr.rel (%p123) target = $region12
      $region11: #{tpu_custom_call.1} parent=5 // pred_region
        %s127 = ssub.s32 %s17, 1
      $region12: #{tpu_custom_call.1} parent=5 // pred_fallthru
        _
      %p128 = scmp.lt.s32.totalorder %s17, 2
      // Predicated region
      $region13: #{tpu_custom_call.1} parent=5 // pred_check
        %p129 = pneg %p128
      $region14: #{tpu_custom_call.1} parent=5 // pred_check_branch
        %131 = sbr.rel (%p129) target = $region16
      $region15: #{tpu_custom_call.1} parent=5 // pred_region
        // Predicated region
        $region17: #{tpu_custom_call.1} parent=15 // pred_check
          %p132 = pneg %p51
        $region18: #{tpu_custom_call.1} parent=15 // pred_check_branch
          %134 = sbr.rel (%p132) target = $region20
        $region19: #{tpu_custom_call.1} parent=15 // pred_region
          %s135 = sand.u32 %s41, 1
          %s136 = scalar_lea.sflag [#allocation3], %s135
          %s137 = sand.u32 %s41, 1
          %s138 = smul.addr %s137, 10
          %s139 = scalar_lea.vmem [#allocation2], %s138
          %141 = vsyncadd %s136, 0
          %s142 = smul.addr %s24, 5
          %s143 = sadd.s32 %s25, %s142
          %s144 = smul.addr %s143, 2
          %s145 = scalar_lea.hbm %s0, %s144
          %s146 = sshll.u32 %s145, 4
          %s147 = int_to_ptr.hbm [resolvable:$true] %s146
          %s148 = sshll.u32 %s139, 4
          %s149 = int_to_ptr.vmem [resolvable:$true] %s148
          %154 = dma.hbm_to_vmem [thread:$0]  %s147, 160, %s149, %s136, 32, 32, 2
        $region20: #{tpu_custom_call.1} parent=15 // pred_fallthru
          _
        // Predicated region
        $region21: #{tpu_custom_call.1} parent=15 // pred_check
          %p155 = pneg %p79
        $region22: #{tpu_custom_call.1} parent=15 // pred_check_branch
          %157 = sbr.rel (%p155) target = $region24
        $region23: #{tpu_custom_call.1} parent=15 // pred_region
          %s158 = sand.u32 %s69, 1
          %s159 = scalar_lea.sflag [#allocation6], %s158
          %s160 = sand.u32 %s69, 1
          %s161 = smul.addr %s160, 2
          %s162 = scalar_lea.vmem [#allocation5], %s161
          %164 = vsyncadd %s159, 0
          %s165 = sadd.s32 %s25, %s24
          %s166 = smul.addr %s165, 2
          %s167 = scalar_lea.hbm %s1, %s166
          %s169 = sshll.u32 %s167, 4
          %s170 = int_to_ptr.hbm [resolvable:$true] %s169
          %s171 = sshll.u32 %s162, 4
          %s172 = int_to_ptr.vmem [resolvable:$true] %s171
          %174 = dma.hbm_to_vmem [thread:$0]  %s170, 32, %s172, %s159
        $region24: #{tpu_custom_call.1} parent=15 // pred_fallthru
          _
      $region16: #{tpu_custom_call.1} parent=5 // pred_fallthru
        _
      %p175 = scmp.le.s32.totalorder 1, %s17
      %p176 = scmp.lt.s32.totalorder %s17, 3
      %p177 = pnand %p175, %p176
      %p178 = pneg %p177
      // Predicated region
      $region25: #{tpu_custom_call.1} parent=5 // pred_check
        _
      $region26: #{tpu_custom_call.1} parent=5 // pred_check_branch
        %180 = sbr.rel (%p177) target = $region28
      $region27: #{tpu_custom_call.1} parent=5 // pred_region
        %s181 = ssub.s32 %s17, 1
        %s182 = sand.u32 %s44, 1
        %s183 = scalar_lea.sflag [#allocation3], %s182
        %s184 = sand.u32 %s44, 1
        %s185 = smul.addr %s184, 10
        %s186 = scalar_lea.vmem [#allocation2], %s185
        // Predicated region
        $region29: #{tpu_custom_call.1} parent=27 // pred_check
          %p187 = pneg %p57
        $region30: #{tpu_custom_call.1} parent=27 // pred_check_branch
          %189 = sbr.rel (%p187) target = $region32
        $region31: #{tpu_custom_call.1} parent=27 // pred_region
          %191 = dma.done %s183, 160
        $region32: #{tpu_custom_call.1} parent=27 // pred_fallthru
          _
        %s192 = sand.u32 %s72, 1
        %s193 = scalar_lea.sflag [#allocation6], %s192
        %s194 = sand.u32 %s72, 1
        %s195 = smul.addr %s194, 2
        %s196 = scalar_lea.vmem [#allocation5], %s195
        // Predicated region
        $region33: #{tpu_custom_call.1} parent=27 // pred_check
          %p197 = pneg %p85
        $region34: #{tpu_custom_call.1} parent=27 // pred_check_branch
          %199 = sbr.rel (%p197) target = $region36
        $region35: #{tpu_custom_call.1} parent=27 // pred_region
          %201 = dma.done %s193, 32
        $region36: #{tpu_custom_call.1} parent=27 // pred_fallthru
          _
        %s202 = sand.u32 %s44, 1
        %s203 = scalar_lea.sflag [#allocation3], %s202
        %s204 = sand.u32 %s44, 1
        %s205 = smul.addr %s204, 10
        %s206 = scalar_lea.vmem [#allocation2], %s205
        %p207 = pneg %p57
        %p208 = pneg %p54
        %s209 = sand.u32 %s72, 1
        %s210 = scalar_lea.sflag [#allocation6], %s209
        %s211 = sand.u32 %s72, 1
        %s212 = smul.addr %s211, 2
        %s213 = scalar_lea.vmem [#allocation5], %s212
        %p214 = pneg %p85
        %p215 = pneg %p82
        %p216 = pneg %p113
        %p217 = pneg %p110
        %s218 = sand.u32 %s100, 1
        %s219 = scalar_lea.sflag [#allocation4], %s218
        %s220 = sand.u32 %s100, 1
        %s221 = smul.addr %s220, 6
        %s222 = scalar_lea.vmem [#allocation7], %s221
        %v223 = vld [vmem:[%s186] sm:$0x3]
        %v224 = vld [vmem:[%s186 + $0x2] sm:$0x3]
        %v225 = vld [vmem:[%s186 + $0x4] sm:$0x3]
        %v226 = vld [vmem:[%s186 + $0x6] sm:$0x3]
        %v227 = vld [vmem:[%s186 + $0x8] sm:$0x3]
        %v228 = vld [vmem:[%s196] sm:$0x3]
        %vm229 = vcmask 1041408
        %v230 = vsel %vm229, %v223, -inf
        %v231 = vsel %vm229, %v224, -inf
        %v232 = vsel %vm229, %v225, -inf
        %v233 = vsel %vm229, %v226, -inf
        %v234 = vsel %vm229, %v227, -inf
        %v235 = vmax.f32 %v230, %v234
        %v236 = vmax.f32 %v235, %v231
        %v237 = vmax.f32 %v232, %v233
        %v238 = vmax.f32 %v236, %v237
        %v239 = vsub.f32 %v223, %v238
        %v240 = vsub.f32 %v224, %v238
        %v241 = vsub.f32 %v225, %v238
        %v242 = vsub.f32 %v226, %v238
        %v243 = vsub.f32 %v227, %v238
        %v244 = vmul.f32 %v239, 1.442695
        %v245 = vpow.pop %v244
        %v246 = vmul.f32 %v240, 1.442695
        %v247 = vpow.pop %v246
        %v248 = vmul.f32 %v241, 1.442695
        %v249 = vpow.pop %v248
        %v250 = vmul.f32 %v242, 1.442695
        %v251 = vpow.pop %v250
        %v252 = vmul.f32 %v243, 1.442695
        %v253 = vpow.pop %v252
        %v254 = vsel %vm229, %v245, 0.0
        %v255 = vsel %vm229, %v247, 0.0
        %v256 = vadd.f32 %v254, %v255
        %v257 = vsel %vm229, %v249, 0.0
        %v258 = vadd.f32 %v256, %v257
        %v259 = vsel %vm229, %v251, 0.0
        %v260 = vadd.f32 %v258, %v259
        %v261 = vsel %vm229, %v253, 0.0
        %v262 = vadd.f32 %v260, %v261
        %vm263 = vcmp.eq.s32.totalorder %v228, 0
        %vm264 = vcmp.eq.s32.totalorder %v228, 1
        %vm265 = vcmp.eq.s32.totalorder %v228, 2
        %vm266 = vcmp.eq.s32.totalorder %v228, 3
        %vm267 = vcmp.eq.s32.totalorder %v228, 4
        %v268 = vsel %vm263, %v223, 0.0
        %v269 = vsel %vm264, %v224, 0.0
        %v270 = vsel %vm265, %v225, 0.0
        %v271 = vsel %vm266, %v226, 0.0
        %v272 = vsel %vm267, %v227, 0.0
        %v273 = vsel %vm229, %v268, 0.0
        %v274 = vsel %vm229, %v269, 0.0
        %v275 = vadd.f32 %v273, %v274
        %v276 = vsel %vm229, %v270, 0.0
        %v277 = vadd.f32 %v275, %v276
        %v278 = vsel %vm229, %v271, 0.0
        %v279 = vadd.f32 %v277, %v278
        %v280 = vsel %vm229, %v272, 0.0
        %v281 = vadd.f32 %v279, %v280
        %v282 = vlog2.pop %v262
        %v283 = vmul.f32 %v282, 0.6931472
        %v284 = vadd.f32 %v283, %v238
        %v285 = vsub.f32 %v284, %v281
        %v286 = vsub.f32 0.0, %v285
        %v287 = vmul.f32 %v286, 1.442695
        %v288 = vpow.pop %v287
        %v289 = vsel %vm263, 1.4543, 0.0
        %v290 = vsel %vm264, 43.8739, %v289
        %v291 = vsel %vm265, 34.241, %v290
        %v292 = vsel %vm266, 47.3663, %v291
        %v293 = vsel %vm267, 27.4869, %v292
        %vm294 = vcmp.ne.s32.totalorder %v228, 4294967295
        %v295 = vsel %vm294, %v288, 2.0
        %296 = vst [vmem:[%s222] sm:$0x3] %v295
        %v297 = vmul.f32 %v293, %v285
        %v298 = vsel %vm294, %v297, 0.0
        %s299 = scalar_lea.vmem %s222, 2 [#allocation7]
        %300 = vst [vmem:[%s299] sm:$0x3] %v298
        %v301 = vsel %vm294, %v293, 0.0
        %s302 = scalar_lea.vmem %s222, 4 [#allocation7]
        %303 = vst [vmem:[%s302] sm:$0x3] %v301
        %s304 = sand.u32 %s100, 1
        %s305 = scalar_lea.sflag [#allocation4], %s304
        %s306 = sand.u32 %s100, 1
        %s307 = smul.addr %s306, 6
        %s308 = scalar_lea.vmem [#allocation7], %s307
        // Predicated region
        $region37: #{tpu_custom_call.1} parent=27 // pred_check
          %p309 = pneg %p110
        $region38: #{tpu_custom_call.1} parent=27 // pred_check_branch
          %311 = sbr.rel (%p309) target = $region40
        $region39: #{tpu_custom_call.1} parent=27 // pred_region
          %313 = vsyncadd %s305, 0
          %s314 = sadd.s32 %s27, %s26
          %s315 = smul.addr %s314, 2
          %s316 = scalar_lea.hbm %s2, %s315
          %s317 = sshll.u32 %s308, 4
          %s318 = int_to_ptr.vmem [resolvable:$true] %s317
          %s319 = sshll.u32 %s316, 4
          %s320 = int_to_ptr.hbm [resolvable:$true] %s319
          %325 = dma.vmem_to_hbm [thread:$0]  %s318, 96, %s320, %s305, 32, 64, 2
        $region40: #{tpu_custom_call.1} parent=27 // pred_fallthru
          _
      $region28: #{tpu_custom_call.1} parent=5 // pred_fallthru
        _
      %p326 = scmp.le.s32.totalorder 2, %s17
      // Predicated region
      $region41: #{tpu_custom_call.1} parent=5 // pred_check
        %p327 = pneg %p326
      $region42: #{tpu_custom_call.1} parent=5 // pred_check_branch
        %329 = sbr.rel (%p327) target = $region44
      $region43: #{tpu_custom_call.1} parent=5 // pred_region
        %s330 = ssub.s32 %s17, 2
        // Predicated region
        $region45: #{tpu_custom_call.1} parent=43 // pred_check
          %p331 = pneg %p116
        $region46: #{tpu_custom_call.1} parent=43 // pred_check_branch
          %333 = sbr.rel (%p331) target = $region48
        $region47: #{tpu_custom_call.1} parent=43 // pred_region
          %s334 = sand.u32 %s101, 1
          %s335 = scalar_lea.sflag [#allocation4], %s334
          %s336 = sand.u32 %s101, 1
          %s337 = smul.addr %s336, 6
          %s338 = scalar_lea.vmem [#allocation7], %s337
          %340 = dma.done %s335, 96
        $region48: #{tpu_custom_call.1} parent=43 // pred_fallthru
          _
      $region44: #{tpu_custom_call.1} parent=5 // pred_fallthru
        _
    $region6: #{tpu_custom_call.1} parent=1 // loop_footer
      %s21 = sadd.s32 1, %s17
    $region7: #{tpu_custom_call.1} parent=1 // loop_footer_branch
      %16 = sbr.rel target = $region3
    $region8: #{tpu_custom_call.1} parent=1 // loop_exit
      _
    %341 = vsyncpa [#allocation3], 1
    %s342 = scalar_lea.sflag [#allocation3], 1
    %343 = vsyncpa %s342, 1
    %344 = vsyncpa [#allocation6], 1
    %s345 = scalar_lea.sflag [#allocation6], 1
    %346 = vsyncpa %s345, 1
    %347 = vsyncpa [#allocation4], 1
    %s348 = scalar_lea.sflag [#allocation4], 1
    %349 = vsyncpa %s348, 1

</llo_original>
